<compile_context>
chip_gen: v7x
topology: tpu7x:2x2x1
jax: 0.10.0
libtpu: 0.0.40
codegen_flags: <defaults>
</compile_context>

<pallas_src>
import functools

import jax
import jax.numpy as jnp
from jax import lax
from jax.experimental import pallas as pl
from jax.experimental.pallas import tpu as pltpu

_LANES = 128
_CHUNK = 1024          # rows per in-kernel sub-chunk (0.5 MiB f32 temporaries)


def _cdiv(a, b):
    return -(-a // b)


def _round_up(a, b):
    return _cdiv(a, b) * b


def _chip_config():
    """(tm_max, vmem_limit_bytes, n_par) tuned per TPU generation."""
    kind = ""
    try:
        kind = jax.devices()[0].device_kind.lower()
    except Exception:
        pass
    if "v7" in kind:
        # 64 MiB VMEM/TC, 2 TensorCores: cap block size, shard leading axis.
        # TODO(synk): verify the p axis actually core-shards on v7x; if not,
        # switch axis 0 to pltpu.CORE_PARALLEL.
        return 4096, 32 * 1024 * 1024, 2
    if ("v6" in kind) or ("v5 lite" in kind) or ("v5lite" in kind) or ("v5e" in kind):
        # 128 MiB VMEM, single TensorCore: go big on blocks, no parallel split.
        return 8192, 64 * 1024 * 1024, 1
    # Unknown chip: conservative defaults that fit a 32 MiB scoped VMEM limit.
    return 4096, 32 * 1024 * 1024, 1


def _masked_distance_kernel(preds_ref, targs_ref, mask_ref,
                            dist_ref, cnt_ref, *,
                            use_l1: bool, tm: int, n_j: int,
                            rows_total: int, rows_chunk: int, n_chunks: int,
                            last_block: int, has_overhang: bool):
    j = pl.program_id(1)
    # Unclamped logical row-block index (input index_map clamps the DMA).
    lb = pl.program_id(0) * n_j + j

    # dist_ref / cnt_ref are resident accumulator blocks (same output block for
    # every j); each parallel index p owns its own block -> init once per p.
    @pl.when(j == 0)
    def _init():
        dist_ref[...] = jnp.zeros_like(dist_ref)
        cnt_ref[...] = jnp.zeros_like(cnt_ref)

    def accumulate(mask_rows: bool):
        zeros = jnp.zeros((8, _LANES), jnp.float32)

        def chunk(c, carry):
            dacc, cacc = carry
            off = c * rows_chunk
            if n_chunks > 1:
                off = pl.multiple_of(off, rows_chunk)
            m = mask_ref[pl.ds(off, rows_chunk), :]
            p = preds_ref[pl.ds(off, rows_chunk), :]
            t = targs_ref[pl.ds(off, rows_chunk), :]

            sel = m != 0          # torch mask.bool() semantics
            pos = m > 0           # torch (mask > 0) count semantics
            if mask_rows:
                # Only ever taken in the final logical block: `last_block` is a
                # static int, so the base row offset is static too.  Garbage
                # (never-DMA'd) overhang rows are neutralized BEFORE any
                # arithmetic reaches the accumulators.
                row = (last_block * tm + off
                       + lax.broadcasted_iota(jnp.int32, (rows_chunk, 1), 0))
                valid = row < rows_total
                sel = jnp.logical_and(sel, valid)
                pos = jnp.logical_and(pos, valid)

            # NaN scrub + single select, in the input dtype (bf16 friendly);
            # square/abs + accumulation in f32.
            p = jnp.where(jnp.isnan(p), jnp.zeros_like(p), p)
            t = jnp.where(jnp.isnan(t), jnp.zeros_like(t), t)
            d = jnp.where(sel, p - t, jnp.zeros_like(p)).astype(jnp.float32)
            contrib = jnp.abs(d) if use_l1 else d * d

            # Fold (rows_chunk, 128) -> (8, 128) with pure vreg-wise VPU adds.
            dacc = dacc + contrib.reshape(rows_chunk // 8, 8, _LANES).sum(axis=0)
            cacc = cacc + pos.astype(jnp.float32).reshape(
                rows_chunk // 8, 8, _LANES).sum(axis=0)
            return dacc, cacc

        if n_chunks == 1:
            dacc, cacc = chunk(0, (zeros, zeros))
        else:
            dacc, cacc = lax.fori_loop(0, n_chunks, chunk, (zeros, zeros),
                                       unroll=(n_chunks <= 4))
        dist_ref[...] += dacc[None]
        cnt_ref[...] += cacc[None]

    if has_overhang:
        @pl.when(lb < last_block)
        def _full_blocks():
            accumulate(False)

        @pl.when(lb == last_block)
        def _last_partial_block():
            accumulate(True)
    else:
        # No overhang: only skip clamped duplicate blocks (lb > last_block).
        @pl.when(lb <= last_block)
        def _all_blocks():
            accumulate(False)


def masked_distance(preds, targs, mask, distance_type='L2'):
    assert preds.shape == targs.shape == mask.shape
    if distance_type not in ('L2', 'L1'):
        # TODO(synk): 'nnse' branch not implemented in the Pallas kernel.
        raise NotImplementedError(
            f"distance_type={distance_type!r} not implemented in Pallas kernel")
    use_l1 = distance_type == 'L1'

    tm_max, vmem_limit, n_par_cfg = _chip_config()

    def as_float(x):
        return x if jnp.issubdtype(x.dtype, jnp.floating) else x.astype(jnp.float32)

    p_flat = jnp.ravel(as_float(preds))
    t_flat = jnp.ravel(as_float(targs))
    m_flat = jnp.ravel(as_float(mask))

    n = int(p_flat.size)
    rows_full = n // _LANES
    rows_main = (rows_full // 8) * 8        # kernel rows: multiple of 8
    n_main = rows_main * _LANES
    tail = n - n_main                       # < 1152 elements, handled in JAX

    dist = jnp.float32(0.0)
    cnt = jnp.float32(0.0)

    if rows_main > 0:
        def to2d(x):
            if n_main != n:
                x = lax.slice(x, (0,), (n_main,))
            return x.reshape(rows_main, _LANES)   # free row-major reshape

        p2d, t2d, m2d = to2d(p_flat), to2d(t_flat), to2d(m_flat)

        if rows_main <= _CHUNK:
            tm = rows_main
            rows_chunk = rows_main
        else:
            nb = _cdiv(rows_main, tm_max)
            tm = _round_up(_cdiv(rows_main, nb), _CHUNK)   # multiple of _CHUNK, <= tm_max
            rows_chunk = _CHUNK
        n_chunks = tm // rows_chunk
        n_row_blocks = _cdiv(rows_main, tm)
        last_block = n_row_blocks - 1
        has_overhang = (rows_main % tm) != 0

        n_par = n_par_cfg if n_row_blocks >= n_par_cfg else 1
        n_j = _cdiv(n_row_blocks, n_par)

        def in_map(pi, ji):
            # Clamp the DMA in-bounds; duplicate/overhang blocks are handled
            # (skipped / row-masked) inside the kernel using the UNCLAMPED index.
            return (jnp.minimum(pi * n_j + ji, last_block), 0)

        in_spec = pl.BlockSpec((tm, _LANES), in_map)
        out_spec = pl.BlockSpec((1, 8, _LANES), lambda pi, ji: (pi, 0, 0))

        bytes_accessed = int(sum(x.size * x.dtype.itemsize for x in (p2d, t2d, m2d))
                             + 2 * n_par * 8 * _LANES * 4)

        dist_out, cnt_out = pl.pallas_call(
            functools.partial(_masked_distance_kernel, use_l1=use_l1, tm=tm,
                              n_j=n_j, rows_total=rows_main,
                              rows_chunk=rows_chunk, n_chunks=n_chunks,
                              last_block=last_block, has_overhang=has_overhang),
            out_shape=(jax.ShapeDtypeStruct((n_par, 8, _LANES), jnp.float32),
                       jax.ShapeDtypeStruct((n_par, 8, _LANES), jnp.float32)),
            grid_spec=pltpu.PrefetchScalarGridSpec(
                num_scalar_prefetch=0,
                grid=(n_par, n_j),
                in_specs=[in_spec, in_spec, in_spec],
                out_specs=[out_spec, out_spec],
            ),
            compiler_params=pltpu.CompilerParams(
                dimension_semantics=("parallel", "arbitrary"),
                vmem_limit_bytes=vmem_limit),
            cost_estimate=pl.CostEstimate(
                flops=10 * n_main, transcendentals=0,
                bytes_accessed=bytes_accessed),
        )(p2d, t2d, m2d)

        dist = dist + jnp.sum(dist_out)
        cnt = cnt + jnp.sum(cnt_out)

    if tail > 0:
        pt = lax.slice(p_flat, (n_main,), (n,))
        tt = lax.slice(t_flat, (n_main,), (n,))
        mt = lax.slice(m_flat, (n_main,), (n,))
        sel = mt != 0
        pc = jnp.where(jnp.isnan(pt), jnp.zeros_like(pt), pt)
        tc = jnp.where(jnp.isnan(tt), jnp.zeros_like(tt), tt)
        d = jnp.where(sel, pc - tc, jnp.zeros_like(pc)).astype(jnp.float32)
        dist = dist + (jnp.sum(jnp.abs(d)) if use_l1 else jnp.sum(d * d))
        cnt = cnt + jnp.sum((mt > 0).astype(jnp.float32))

    return dist + jnp.float32(1e-6) / (cnt + jnp.float32(1.0))


def _reference(preds, targs, mask, distance_type='L2'):
    m = mask != 0
    p = jnp.where(m, preds, 0.0)
    t = jnp.where(m, targs, 0.0)
    p = jnp.where(jnp.isnan(p), 0.0, p)
    t = jnp.where(jnp.isnan(t), 0.0, t)
    if distance_type == 'L2':
        dist = jnp.sum((p - t) ** 2)
    else:
        dist = jnp.sum(jnp.abs(p - t))
    cnt = jnp.sum((mask > 0).astype(jnp.float32))
    return dist + 1e-6 / (cnt + 1.0)


if __name__ == "__main__":
    key = jax.random.PRNGKey(0)

    def run_case(shape, k):
        k1, k2, k3 = jax.random.split(k, 3)
        preds = jax.random.normal(k1, shape, dtype=jnp.float32)
        targs = jax.random.normal(k2, shape, dtype=jnp.float32)
        mask = (jax.random.uniform(k3, shape) > 0.5).astype(jnp.float32)
        # Exercise the NaN-scrubbing path (first and last element).
        preds = preds.at[(0,) * len(shape)].set(jnp.nan)
        targs = targs.at[tuple(s - 1 for s in shape)].set(jnp.nan)
        for dist_type in ('L2', 'L1'):
            out = jax.block_until_ready(
                masked_distance(preds, targs, mask, dist_type))
            ref = _reference(preds, targs, mask, dist_type)
            assert jnp.allclose(out, ref, rtol=1e-4, atol=1e-5), (
                shape, dist_type, out, ref)

    # Shapes consistent with the module ([B, C, H, W]):
    #  - small aligned shape (single block, single chunk)
    #  - non-128-aligned shape (kernel prefix + plain-JAX tail path)
    #  - medium shape exercising the partial-last-block row-mask path
    #  - larger shape exercising multi-block accumulation + chunk loop
    shapes = [(2, 4, 16, 16), (3, 5, 7, 11), (5, 9, 128, 128), (8, 16, 128, 128)]
    for idx, shape in enumerate(shapes):
        run_case(shape, jax.random.fold_in(key, idx))

    print("KERNEL_OK")
</pallas_src>

<mosaic_0001>
module attributes {stable_mosaic.version = 11 : i64} {
  func.func @_masked_distance_kernel(%arg0: i32, %arg1: i32, %arg2: memref<16x128xf32, #tpu.memory_space<vmem>>, %arg3: memref<16x128xf32, #tpu.memory_space<vmem>>, %arg4: memref<16x128xf32, #tpu.memory_space<vmem>>, %arg5: memref<1x8x128xf32, #tpu.memory_space<vmem>>, %arg6: memref<1x8x128xf32, #tpu.memory_space<vmem>>) attributes {dimension_semantics = [#tpu.dimension_semantics<parallel>, #tpu.dimension_semantics<arbitrary>], iteration_bounds = array<i64: 1, 1>, scalar_prefetch = 0 : i64, scratch_operands = 0 : i64, tpu.core_type = #tpu.core_type<tc>, window_params = [{transform_indices = @transform_0, window_bounds = array<i64: 16, 128>}, {transform_indices = @transform_1, window_bounds = array<i64: 16, 128>}, {transform_indices = @transform_2, window_bounds = array<i64: 16, 128>}, {transform_indices = @transform_3, window_bounds = array<i64: 1, 8, 128>}, {transform_indices = @transform_4, window_bounds = array<i64: 1, 8, 128>}]} {
    %c1_i32 = arith.constant 1 : i32
    %0 = arith.muli %arg0, %c1_i32 : i32
    %1 = arith.addi %0, %arg1 : i32
    %c0_i32 = arith.constant 0 : i32
    %2 = arith.cmpi eq, %arg1, %c0_i32 : i32
    %3 = arith.extui %2 : i1 to i32
    %c0_i32_0 = arith.constant 0 : i32
    %4 = arith.cmpi ne, %3, %c0_i32_0 : i32
    scf.if %4 {
      %cst = arith.constant 0.000000e+00 : f32
      %8 = vector.broadcast %cst : f32 to vector<1x8x128xf32>
      %c0 = arith.constant 0 : index
      %c0_3 = arith.constant 0 : index
      %c0_4 = arith.constant 0 : index
      %9 = vector.load %arg5[%c0, %c0_3, %c0_4] : memref<1x8x128xf32, #tpu.memory_space<vmem>>, vector<1x8x128xf32>
      tpu.vector_store %arg5[%c0, %c0_3, %c0_4], %8 {strides = array<i32>} : memref<1x8x128xf32, #tpu.memory_space<vmem>>, vector<1x8x128xf32>,
      %cst_5 = arith.constant 0.000000e+00 : f32
      %10 = vector.broadcast %cst_5 : f32 to vector<1x8x128xf32>
      %c0_6 = arith.constant 0 : index
      %c0_7 = arith.constant 0 : index
      %c0_8 = arith.constant 0 : index
      %11 = vector.load %arg6[%c0_6, %c0_7, %c0_8] : memref<1x8x128xf32, #tpu.memory_space<vmem>>, vector<1x8x128xf32>
      tpu.vector_store %arg6[%c0_6, %c0_7, %c0_8], %10 {strides = array<i32>} : memref<1x8x128xf32, #tpu.memory_space<vmem>>, vector<1x8x128xf32>,
    } else {
    }
    %c0_i32_1 = arith.constant 0 : i32
    %5 = arith.cmpi sle, %1, %c0_i32_1 : i32
    %6 = arith.extui %5 : i1 to i32
    %c0_i32_2 = arith.constant 0 : i32
    %7 = arith.cmpi ne, %6, %c0_i32_2 : i32
    scf.if %7 {
      %cst = arith.constant 0.000000e+00 : f32
      %8 = vector.broadcast %cst : f32 to vector<8x128xf32>
      %c0 = arith.constant 0 : index
      %c0_3 = arith.constant 0 : index
      %9 = vector.load %arg4[%c0, %c0_3] : memref<16x128xf32, #tpu.memory_space<vmem>>, vector<16x128xf32>
      %c0_4 = arith.constant 0 : index
      %c0_5 = arith.constant 0 : index
      %10 = vector.load %arg2[%c0_4, %c0_5] : memref<16x128xf32, #tpu.memory_space<vmem>>, vector<16x128xf32>
      %c0_6 = arith.constant 0 : index
      %c0_7 = arith.constant 0 : index
      %11 = vector.load %arg3[%c0_6, %c0_7] : memref<16x128xf32, #tpu.memory_space<vmem>>, vector<16x128xf32>
      %cst_8 = arith.constant 0.000000e+00 : f32
      %12 = vector.broadcast %cst_8 : f32 to vector<16x128xf32>
      %13 = arith.cmpf one, %9, %12 : vector<16x128xf32>
      %cst_9 = arith.constant 0.000000e+00 : f32
      %14 = vector.broadcast %cst_9 : f32 to vector<16x128xf32>
      %15 = arith.cmpf ogt, %9, %14 : vector<16x128xf32>
      %16 = arith.cmpf one, %10, %10 : vector<16x128xf32>
      %cst_10 = arith.constant 0.000000e+00 : f32
      %17 = vector.broadcast %cst_10 : f32 to vector<16x128xf32>
      %18 = arith.select %16, %17, %10 : vector<16x128xi1>, vector<16x128xf32>
      %19 = arith.cmpf one, %11, %11 : vector<16x128xf32>
      %cst_11 = arith.constant 0.000000e+00 : f32
      %20 = vector.broadcast %cst_11 : f32 to vector<16x128xf32>
      %21 = arith.select %19, %20, %11 : vector<16x128xi1>, vector<16x128xf32>
      %22 = arith.subf %18, %21 : vector<16x128xf32>
      %cst_12 = arith.constant 0.000000e+00 : f32
      %23 = vector.broadcast %cst_12 : f32 to vector<16x128xf32>
      %24 = arith.select %13, %22, %23 : vector<16x128xi1>, vector<16x128xf32>
      %25 = arith.mulf %24, %24 : vector<16x128xf32>
      %26 = vector.shape_cast %25 : vector<16x128xf32> to vector<2x8x128xf32>
      %cst_13 = arith.constant dense<0.000000e+00> : vector<8x128xf32>
      %27 = vector.multi_reduction <add>, %26, %cst_13 [0] : vector<2x8x128xf32> to vector<8x128xf32>
      %28 = arith.addf %8, %27 : vector<8x128xf32>
      %29 = arith.extui %15 : vector<16x128xi1> to vector<16x128xi32>
      %30 = arith.sitofp %29 : vector<16x128xi32> to vector<16x128xf32>
      %31 = vector.shape_cast %30 : vector<16x128xf32> to vector<2x8x128xf32>
      %cst_14 = arith.constant dense<0.000000e+00> : vector<8x128xf32>
      %32 = vector.multi_reduction <add>, %31, %cst_14 [0] : vector<2x8x128xf32> to vector<8x128xf32>
      %33 = arith.addf %8, %32 : vector<8x128xf32>
      %c0_15 = arith.constant 0 : index
      %c0_16 = arith.constant 0 : index
      %c0_17 = arith.constant 0 : index
      %34 = vector.load %arg5[%c0_15, %c0_16, %c0_17] : memref<1x8x128xf32, #tpu.memory_space<vmem>>, vector<1x8x128xf32>
      %35 = vector.shape_cast %28 : vector<8x128xf32> to vector<1x8x128xf32>
      %36 = arith.addf %34, %35 : vector<1x8x128xf32>
      %c0_18 = arith.constant 0 : index
      %c0_19 = arith.constant 0 : index
      %c0_20 = arith.constant 0 : index
      %37 = vector.load %arg5[%c0_18, %c0_19, %c0_20] : memref<1x8x128xf32, #tpu.memory_space<vmem>>, vector<1x8x128xf32>
      tpu.vector_store %arg5[%c0_18, %c0_19, %c0_20], %36 {strides = array<i32>} : memref<1x8x128xf32, #tpu.memory_space<vmem>>, vector<1x8x128xf32>,
      %c0_21 = arith.constant 0 : index
      %c0_22 = arith.constant 0 : index
      %c0_23 = arith.constant 0 : index
      %38 = vector.load %arg6[%c0_21, %c0_22, %c0_23] : memref<1x8x128xf32, #tpu.memory_space<vmem>>, vector<1x8x128xf32>
      %39 = vector.shape_cast %33 : vector<8x128xf32> to vector<1x8x128xf32>
      %40 = arith.addf %38, %39 : vector<1x8x128xf32>
      %c0_24 = arith.constant 0 : index
      %c0_25 = arith.constant 0 : index
      %c0_26 = arith.constant 0 : index
      %41 = vector.load %arg6[%c0_24, %c0_25, %c0_26] : memref<1x8x128xf32, #tpu.memory_space<vmem>>, vector<1x8x128xf32>
      tpu.vector_store %arg6[%c0_24, %c0_25, %c0_26], %40 {strides = array<i32>} : memref<1x8x128xf32, #tpu.memory_space<vmem>>, vector<1x8x128xf32>,
    } else {
    }
    return
  }
  func.func @transform_0(%arg0: i32, %arg1: i32) -> (i32, i32) {
    %c1_i32 = arith.constant 1 : i32
    %0 = arith.muli %arg0, %c1_i32 : i32
    %1 = arith.addi %0, %arg1 : i32
    %c0_i32 = arith.constant 0 : i32
    %2 = arith.minsi %1, %c0_i32 : i32
    %c0_i32_0 = arith.constant 0 : i32
    %c0_i32_1 = arith.constant 0 : i32
    return %2, %c0_i32_0 : i32, i32
  }
  func.func @transform_1(%arg0: i32, %arg1: i32) -> (i32, i32) {
    %c1_i32 = arith.constant 1 : i32
    %0 = arith.muli %arg0, %c1_i32 : i32
    %1 = arith.addi %0, %arg1 : i32
    %c0_i32 = arith.constant 0 : i32
    %2 = arith.minsi %1, %c0_i32 : i32
    %c0_i32_0 = arith.constant 0 : i32
    %c0_i32_1 = arith.constant 0 : i32
    return %2, %c0_i32_0 : i32, i32
  }
  func.func @transform_2(%arg0: i32, %arg1: i32) -> (i32, i32) {
    %c1_i32 = arith.constant 1 : i32
    %0 = arith.muli %arg0, %c1_i32 : i32
    %1 = arith.addi %0, %arg1 : i32
    %c0_i32 = arith.constant 0 : i32
    %2 = arith.minsi %1, %c0_i32 : i32
    %c0_i32_0 = arith.constant 0 : i32
    %c0_i32_1 = arith.constant 0 : i32
    return %2, %c0_i32_0 : i32, i32
  }
  func.func @transform_3(%arg0: i32, %arg1: i32) -> (i32, i32, i32) {
    %c0_i32 = arith.constant 0 : i32
    %c0_i32_0 = arith.constant 0 : i32
    %c0_i32_1 = arith.constant 0 : i32
    return %arg0, %c0_i32, %c0_i32_0 : i32, i32, i32
  }
  func.func @transform_4(%arg0: i32, %arg1: i32) -> (i32, i32, i32) {
    %c0_i32 = arith.constant 0 : i32
    %c0_i32_0 = arith.constant 0 : i32
    %c0_i32_1 = arith.constant 0 : i32
    return %arg0, %c0_i32, %c0_i32_0 : i32, i32, i32
  }
}

</mosaic_0001>

<llo_original>
// kernel: tpu_custom_call.1
$region0: #{tpu_custom_call.1}
  #allocation0 [shape = 'u32[]', space=smem, size = 0x4, offset = 0x4, fixed_abs, tag = 'smem constant byte address 0x4 - core index']
  #allocation1 [shape = 'u32[144,128]{1,0:T(1,128)}', space=vmem, size = 0x12000, scoped, tag = 'internal scratch']
  %s0 = inlined_call_operand.hbm [shape: f32[16,128], index: 0, kind: input, shape index: {}]
  %s1 = inlined_call_operand.hbm [shape: f32[16,128], index: 1, kind: input, shape index: {}]
  %s2 = inlined_call_operand.hbm [shape: f32[16,128], index: 2, kind: input, shape index: {}]
  %s3 = inlined_call_operand.hbm [shape: f32[1,8,128], index: 3, kind: output, shape index: {0}]
  %s4 = inlined_call_operand.hbm [shape: f32[1,8,128], index: 4, kind: output, shape index: {1}]
  %5 = xla_tuple %s3, %s4
  %s6 = sld [smem:[#allocation0]]
  $region50: #{tpu_custom_call.1} parent=0
    _
  %s8 = ssub.s32 1, %s6
  %s9 = scalar_select 0, %s8, %s6
  $region1: #{tpu_custom_call.1} parent=0
    #allocation2 [shape = 'u8[8192]{0}', space=vmem, size = 0x2000, scoped, tag = 'input window, operand 0, single buffered']
    #allocation3 [shape = 's32[1]{0}', space=sflag, size = 0x4, scoped, tag = 'scoped memory for tpu_custom_call.1']
    #allocation4 [shape = 's32[1]{0}', space=sflag, size = 0x4, scoped, tag = 'scoped memory for tpu_custom_call.1']
    #allocation5 [shape = 'u8[8192]{0}', space=vmem, size = 0x2000, scoped, tag = 'input window, operand 1, single buffered']
    #allocation6 [shape = 's32[1]{0}', space=sflag, size = 0x4, scoped, tag = 'scoped memory for tpu_custom_call.1']
    #allocation7 [shape = 'u8[8192]{0}', space=vmem, size = 0x2000, scoped, tag = 'input window, operand 2, single buffered']
    #allocation8 [shape = 'u8[4096]{0}', space=vmem, size = 0x1000, scoped, tag = 'output window, operand 0, single buffered']
    #allocation9 [shape = 'u8[4096]{0}', space=vmem, size = 0x1000, scoped, tag = 'output window, operand 1, single buffered']
    #allocation10 [shape = 's32[1]{0}', space=sflag, size = 0x4, scoped, tag = 'scoped memory for tpu_custom_call.1']
    %10 = vsyncpa [#allocation3], 0
    %11 = vsyncpa [#allocation6], 0
    %12 = vsyncpa [#allocation4], 0
    %13 = vsyncpa [#allocation10], 0
    // Predicated region
    $region2: #{tpu_custom_call.1} parent=1 // pred_check
      _
    $region3: #{tpu_custom_call.1} parent=1 // pred_check_branch
      %15 = sbr.rel (0) target = $region5
    $region4: #{tpu_custom_call.1} parent=1 // pred_region
      %s16 = sadd.s32 0, 0
      %p17 = scmp.lt.s32.totalorder %s16, 0
      %s18 = scalar_select %p17, %s16, 0
      %s19 = smul.u32 2, %s18
      %s21 = ssub.s32 256, 256
      %22 = vsyncadd [#allocation3], %s21
      %s23 = smul.addr %s19, 128
      %s24 = scalar_lea.hbm %s0, %s23
      %s25 = sshll.u32 [#allocation2], 4
      %s26 = int_to_ptr.vmem [resolvable:$true] %s25
      %31 = dma.hbm_to_vmem [thread:$0]  %s24, 256, %s26, [#allocation3], 128, 128, 8
    $region5: #{tpu_custom_call.1} parent=1 // pred_fallthru
      _
    // Predicated region
    $region6: #{tpu_custom_call.1} parent=1 // pred_check
      _
    $region7: #{tpu_custom_call.1} parent=1 // pred_check_branch
      %33 = sbr.rel (0) target = $region9
    $region8: #{tpu_custom_call.1} parent=1 // pred_region
      %s34 = sadd.s32 0, 0
      %p35 = scmp.lt.s32.totalorder %s34, 0
      %s36 = scalar_select %p35, %s34, 0
      %s37 = smul.u32 2, %s36
      %s39 = ssub.s32 256, 256
      %40 = vsyncadd [#allocation6], %s39
      %s41 = smul.addr %s37, 128
      %s42 = scalar_lea.hbm %s1, %s41
      %s43 = sshll.u32 [#allocation5], 4
      %s44 = int_to_ptr.vmem [resolvable:$true] %s43
      %49 = dma.hbm_to_vmem [thread:$0]  %s42, 256, %s44, [#allocation6], 128, 128, 8
    $region9: #{tpu_custom_call.1} parent=1 // pred_fallthru
      _
    // Predicated region
    $region10: #{tpu_custom_call.1} parent=1 // pred_check
      _
    $region11: #{tpu_custom_call.1} parent=1 // pred_check_branch
      %51 = sbr.rel (0) target = $region13
    $region12: #{tpu_custom_call.1} parent=1 // pred_region
      %s52 = sadd.s32 0, 0
      %p53 = scmp.lt.s32.totalorder %s52, 0
      %s54 = scalar_select %p53, %s52, 0
      %s55 = smul.u32 2, %s54
      %s57 = ssub.s32 256, 256
      %58 = vsyncadd [#allocation6], %s57
      %s59 = smul.addr %s55, 128
      %s60 = scalar_lea.hbm %s2, %s59
      %s61 = sshll.u32 [#allocation7], 4
      %s62 = int_to_ptr.vmem [resolvable:$true] %s61
      %67 = dma.hbm_to_vmem [thread:$0]  %s60, 256, %s62, [#allocation6], 128, 128, 8
    $region13: #{tpu_custom_call.1} parent=1 // pred_fallthru
      _
    // Predicated region
    $region14: #{tpu_custom_call.1} parent=1 // pred_check
      _
    $region15: #{tpu_custom_call.1} parent=1 // pred_check_branch
      %69 = sbr.rel (0) target = $region17
    $region16: #{tpu_custom_call.1} parent=1 // pred_region
      %70 = dma.done [#allocation3], 256
    $region17: #{tpu_custom_call.1} parent=1 // pred_fallthru
      _
    // Predicated region
    $region18: #{tpu_custom_call.1} parent=1 // pred_check
      _
    $region19: #{tpu_custom_call.1} parent=1 // pred_check_branch
      %72 = sbr.rel (0) target = $region21
    $region20: #{tpu_custom_call.1} parent=1 // pred_region
      %73 = dma.done [#allocation6], 256
    $region21: #{tpu_custom_call.1} parent=1 // pred_fallthru
      _
    // Predicated region
    $region22: #{tpu_custom_call.1} parent=1 // pred_check
      _
    $region23: #{tpu_custom_call.1} parent=1 // pred_check_branch
      %75 = sbr.rel (0) target = $region25
    $region24: #{tpu_custom_call.1} parent=1 // pred_region
      %76 = dma.done [#allocation6], 256
    $region25: #{tpu_custom_call.1} parent=1 // pred_fallthru
      _
    %s77 = sadd.s32 0, 0
    %p78 = scmp.lt.s32.totalorder %s77, 0
    %s79 = scalar_select %p78, %s77, 0
    %s80 = smul.u32 2, %s79
    %s81 = sadd.s32 0, 0
    %p82 = scmp.lt.s32.totalorder %s81, 0
    %s83 = scalar_select %p82, %s81, 0
    %s84 = smul.u32 2, %s83
    %s85 = sadd.s32 0, 0
    %p86 = scmp.lt.s32.totalorder %s85, 0
    %s87 = scalar_select %p86, %s85, 0
    %s88 = smul.u32 2, %s87
    %s89 = sadd.s32 0, 0
    %p90 = scmp.eq.s32.totalorder 0, 0
    // Predicated region
    $region26: #{tpu_custom_call.1} parent=1 // pred_check
      %p91 = pneg %p90
    $region27: #{tpu_custom_call.1} parent=1 // pred_check_branch
      %93 = sbr.rel (%p91) target = $region29
    $region28: #{tpu_custom_call.1} parent=1 // pred_region
      %94 = vst [vmem:[#allocation8] sm:$0xff] 0.0
      %95 = vst [vmem:[#allocation9] sm:$0xff] 0.0
    $region29: #{tpu_custom_call.1} parent=1 // pred_fallthru
      _
    %p96 = scmp.le.s32.totalorder %s89, 0
    // Predicated region
    $region30: #{tpu_custom_call.1} parent=1 // pred_check
      %p97 = pneg %p96
    $region31: #{tpu_custom_call.1} parent=1 // pred_check_branch
      %99 = sbr.rel (%p97) target = $region33
    $region32: #{tpu_custom_call.1} parent=1 // pred_region
      %v100 = vld [vmem:[#allocation7] sm:$0xff]
      %v101 = vld [vmem:[#allocation7 + $0x8] sm:$0xff]
      %v102 = vld [vmem:[#allocation2] sm:$0xff]
      %v103 = vld [vmem:[#allocation2 + $0x8] sm:$0xff]
      %v104 = vld [vmem:[#allocation5] sm:$0xff]
      %v105 = vld [vmem:[#allocation5 + $0x8] sm:$0xff]
      %vm106 = vcmp.ne.f32.partialorder %v100, 0.0
      %vm107 = vcmp.ne.f32.partialorder %v101, 0.0
      %vm108 = vcmp.gt.f32.partialorder %v100, 0.0
      %vm109 = vcmp.gt.f32.partialorder %v101, 0.0
      %vm110 = vcmp.ne.f32.partialorder %v102, %v102
      %vm111 = vcmp.ne.f32.partialorder %v103, %v103
      %v112 = vsel %vm110, 0.0, %v102
      %v113 = vsel %vm111, 0.0, %v103
      %vm114 = vcmp.ne.f32.partialorder %v104, %v104
      %vm115 = vcmp.ne.f32.partialorder %v105, %v105
      %v116 = vsel %vm114, 0.0, %v104
      %v117 = vsel %vm115, 0.0, %v105
      %v118 = vsub.f32 %v112, %v116
      %v119 = vsub.f32 %v113, %v117
      %v120 = vsel %vm106, %v118, 0.0
      %v121 = vsel %vm107, %v119, 0.0
      %v122 = vmul.f32 %v120, %v120
      %v123 = vmul.f32 %v121, %v121
      %v124 = vadd.f32 %v122, %v123
      %v125 = vadd.f32 %v124, 0.0
      %v126 = vsel %vm108, 1, 0
      %v127 = vsel %vm109, 1, 0
      %v128 = vcvt.s32.f32 %v126
      %v129 = vcvt.s32.f32 %v127
      %v130 = vadd.f32 %v128, %v129
      %v131 = vadd.f32 %v130, 0.0
      %v132 = vld [vmem:[#allocation8] sm:$0xff]
      %v133 = vadd.f32 %v132, %v125
      %134 = vst [vmem:[#allocation8] sm:$0xff] %v133
      %v135 = vld [vmem:[#allocation9] sm:$0xff]
      %v136 = vadd.f32 %v135, %v131
      %137 = vst [vmem:[#allocation9] sm:$0xff] %v136
    $region33: #{tpu_custom_call.1} parent=1 // pred_fallthru
      _
    // Predicated region
    $region34: #{tpu_custom_call.1} parent=1 // pred_check
      _
    $region35: #{tpu_custom_call.1} parent=1 // pred_check_branch
      %139 = sbr.rel (0) target = $region37
    $region36: #{tpu_custom_call.1} parent=1 // pred_region
      %s141 = ssub.s32 128, 128
      %142 = vsyncadd [#allocation4], %s141
      %s144 = sshll.u32 [#allocation8], 4
      %s145 = int_to_ptr.vmem [resolvable:$true] %s144
      %147 = dma.vmem_to_hbm [thread:$0]  %s145, 128, %s3, [#allocation4]
    $region37: #{tpu_custom_call.1} parent=1 // pred_fallthru
      _
    // Predicated region
    $region38: #{tpu_custom_call.1} parent=1 // pred_check
      _
    $region39: #{tpu_custom_call.1} parent=1 // pred_check_branch
      %149 = sbr.rel (0) target = $region41
    $region40: #{tpu_custom_call.1} parent=1 // pred_region
      %s151 = ssub.s32 128, 128
      %152 = vsyncadd [#allocation10], %s151
      %s154 = sshll.u32 [#allocation9], 4
      %s155 = int_to_ptr.vmem [resolvable:$true] %s154
      %157 = dma.vmem_to_hbm [thread:$0]  %s155, 128, %s4, [#allocation10]
    $region41: #{tpu_custom_call.1} parent=1 // pred_fallthru
      _
    // Predicated region
    $region42: #{tpu_custom_call.1} parent=1 // pred_check
      _
    $region43: #{tpu_custom_call.1} parent=1 // pred_check_branch
      %159 = sbr.rel (0) target = $region45
    $region44: #{tpu_custom_call.1} parent=1 // pred_region
      %160 = dma.done [#allocation4], 128
    $region45: #{tpu_custom_call.1} parent=1 // pred_fallthru
      _
    // Predicated region
    $region46: #{tpu_custom_call.1} parent=1 // pred_check
      _
    $region47: #{tpu_custom_call.1} parent=1 // pred_check_branch
      %162 = sbr.rel (0) target = $region49
    $region48: #{tpu_custom_call.1} parent=1 // pred_region
      %163 = dma.done [#allocation10], 128
    $region49: #{tpu_custom_call.1} parent=1 // pred_fallthru
      _
    %164 = vsyncpa [#allocation3], 1
    %165 = vsyncpa [#allocation6], 1
    %166 = vsyncpa [#allocation4], 1
    %167 = vsyncpa [#allocation10], 1

</llo_original>
